<compile_context>
chip_gen: v6e
topology: v6e:2x2x1
jax: 0.10.0
libtpu: 0.0.40
codegen_flags: <defaults>
</compile_context>

<pallas_src>
import math

import jax
import jax.numpy as jnp
from jax.experimental import pallas as pl
from jax.experimental.pallas import tpu as pltpu


def _layer_scale_kernel(x_ref, g_ref, o_ref):
    # x_ref: (TM, W) tile, g_ref: (1, W) gamma row (same block every step),
    # o_ref: (TM, W). The (1, W) -> (TM, W) broadcast happens in the VPU mul.
    o_ref[...] = x_ref[...] * g_ref[...]


def _choose_row_tile(rows: int, width: int, itemsize: int,
                     budget_bytes: int = 32 << 20) -> int:
    """Largest row tile whose double-buffered in+out footprint fits `budget_bytes`."""
    bytes_per_row = width * itemsize
    tm = budget_bytes // (4 * bytes_per_row)          # 2 input bufs + 2 output bufs
    # Sublane alignment: 8 rows (32-bit), 16 (16-bit), 32 (8-bit).
    align = max(8, 32 // itemsize)
    tm = (tm // align) * align
    if tm <= 0:
        tm = align
    if tm >= rows:
        return rows                                   # full-extent block is always legal
    return tm


def layer_scale(x: jax.Array, gamma: jax.Array) -> jax.Array:
    """LayerScale forward: x * gamma (broadcast over last axis). x: [..., D], gamma: [D]."""
    orig_shape = x.shape
    D = orig_shape[-1]
    assert gamma.shape == (D,)
    total = math.prod(orig_shape)

    # Lane-dense layout: make the last (lane) dim a multiple of 128 when possible.
    lane_w = (D * 128) // math.gcd(D, 128)            # lcm(D, 128)
    if total % lane_w == 0:
        W = lane_w
    else:
        W = D  # TODO(synk): pad D up to a multiple of 128 for fully dense stores
    reps = W // D
    rows = total // W

    x2 = x.reshape(rows, W)                           # free reshape outside the kernel
    g2 = jnp.tile(gamma, reps).reshape(1, W).astype(x.dtype)

    itemsize = jnp.dtype(x.dtype).itemsize
    tm = _choose_row_tile(rows, W, itemsize)
    grid = (pl.cdiv(rows, tm),)                       # partial last block handled by Pallas

    # Scoped-VMEM limit sized to the double-buffered footprint (+ slack),
    # capped well under v7x's 64 MiB physical VMEM.
    footprint = 4 * tm * W * itemsize + 2 * W * itemsize
    vmem_limit = int(min(48 << 20, max(footprint + (2 << 20), 16 << 20)))

    out = pl.pallas_call(
        _layer_scale_kernel,
        out_shape=jax.ShapeDtypeStruct((rows, W), x.dtype),
        grid=grid,
        in_specs=[
            pl.BlockSpec((tm, W), lambda i: (i, 0)),
            pl.BlockSpec((1, W), lambda i: (0, 0)),
        ],
        out_specs=pl.BlockSpec((tm, W), lambda i: (i, 0)),
        compiler_params=pltpu.CompilerParams(
            dimension_semantics=("parallel",),
            vmem_limit_bytes=vmem_limit,
        ),
    )(x2, g2)
    return out.reshape(orig_shape)


if __name__ == "__main__":
    key = jax.random.PRNGKey(0)
    init_values = 1e-5

    # Small shapes matching the adapter-ViT LayerScale usage: [B, N, D].
    B, N, D = 2, 8, 32
    x = jax.random.normal(key, (B, N, D), dtype=jnp.float32)
    gamma = init_values * jnp.ones((D,), dtype=jnp.float32)  # init_values * ones(dim)

    out = layer_scale(x, gamma)
    jax.block_until_ready(out)
    ref = x * gamma
    assert out.shape == x.shape
    assert jnp.allclose(out, ref, atol=1e-6, rtol=1e-6), "mismatch vs reference (D=32 path)"

    # Second small check exercising the D % 128 == 0 (already lane-dense) path.
    k2 = jax.random.PRNGKey(0)
    B2, N2, D2 = 2, 16, 128
    x2 = jax.random.normal(k2, (B2, N2, D2), dtype=jnp.float32)
    g2 = init_values * jnp.ones((D2,), dtype=jnp.float32)
    out2 = layer_scale(x2, g2)
    jax.block_until_ready(out2)
    assert jnp.allclose(out2, x2 * g2, atol=1e-6, rtol=1e-6), "mismatch vs reference (D=128 path)"

    print("KERNEL_OK")
</pallas_src>

<mosaic_0001>
module attributes {stable_mosaic.version = 11 : i64} {
  func.func @_layer_scale_kernel(%arg0: i32, %arg1: memref<4x128xf32, #tpu.memory_space<vmem>>, %arg2: memref<1x128xf32, #tpu.memory_space<vmem>>, %arg3: memref<4x128xf32, #tpu.memory_space<vmem>>) attributes {dimension_semantics = [#tpu.dimension_semantics<parallel>], iteration_bounds = array<i64: 1>, scalar_prefetch = 0 : i64, scratch_operands = 0 : i64, tpu.core_type = #tpu.core_type<tc>, window_params = [{transform_indices = @transform_0, window_bounds = array<i64: 4, 128>}, {pipeline_mode = #tpu.pipeline_mode<synchronous>, transform_indices = @transform_1, window_bounds = array<i64: 1, 128>}, {transform_indices = @transform_2, window_bounds = array<i64: 4, 128>}]} {
    %c0 = arith.constant 0 : index
    %c0_0 = arith.constant 0 : index
    %0 = vector.load %arg1[%c0, %c0_0] : memref<4x128xf32, #tpu.memory_space<vmem>>, vector<4x128xf32>
    %c0_1 = arith.constant 0 : index
    %c0_2 = arith.constant 0 : index
    %1 = vector.load %arg2[%c0_1, %c0_2] : memref<1x128xf32, #tpu.memory_space<vmem>>, vector<1x128xf32>
    %2 = vector.broadcast %1 : vector<1x128xf32> to vector<4x128xf32>
    %3 = arith.mulf %0, %2 : vector<4x128xf32>
    %c0_3 = arith.constant 0 : index
    %c0_4 = arith.constant 0 : index
    %4 = vector.load %arg3[%c0_3, %c0_4] : memref<4x128xf32, #tpu.memory_space<vmem>>, vector<4x128xf32>
    tpu.vector_store %arg3[%c0_3, %c0_4], %3 {strides = array<i32>} : memref<4x128xf32, #tpu.memory_space<vmem>>, vector<4x128xf32>,
    return
  }
  func.func @transform_0(%arg0: i32) -> (i32, i32) {
    %c0_i32 = arith.constant 0 : i32
    %c0_i32_0 = arith.constant 0 : i32
    return %arg0, %c0_i32 : i32, i32
  }
  func.func @transform_1(%arg0: i32) -> (i32, i32) {
    %c0_i32 = arith.constant 0 : i32
    %c0_i32_0 = arith.constant 0 : i32
    %c0_i32_1 = arith.constant 0 : i32
    return %c0_i32, %c0_i32_0 : i32, i32
  }
  func.func @transform_2(%arg0: i32) -> (i32, i32) {
    %c0_i32 = arith.constant 0 : i32
    %c0_i32_0 = arith.constant 0 : i32
    return %arg0, %c0_i32 : i32, i32
  }
}

</mosaic_0001>

<llo_original>
// kernel: tpu_custom_call.1
$region0: #{tpu_custom_call.1}
  #allocation0 [shape = 'u32[]', space=smem, size = 0x4, offset = 0x4, fixed_abs, tag = 'smem constant byte address 0x4 - core index']
  #allocation1 [shape = 'u32[144,128]{1,0:T(1,128)}', space=vmem, size = 0x12000, scoped, tag = 'internal scratch']
  %s0 = inlined_call_operand.hbm [shape: f32[4,128], index: 0, kind: input, shape index: {}]
  %s1 = inlined_call_operand.vmem [shape: f32[1,128], index: 1, kind: input, shape index: {}]
  %s2 = inlined_call_operand.hbm [shape: f32[4,128], index: 2, kind: output, shape index: {}]
  %s3 = sld [smem:[#allocation0]]
  $region22: #{tpu_custom_call.1} parent=0
    _
  %s5 = ssub.s32 1, %s3
  %s6 = scalar_select 0, %s5, %s3
  $region1: #{tpu_custom_call.1} parent=0
    #allocation2 [shape = 'u8[2048]{0}', space=vmem, size = 0x800, scoped, tag = 'input window, operand 0, single buffered']
    #allocation3 [shape = 's32[1]{0}', space=sflag, size = 0x4, scoped, tag = 'scoped memory for tpu_custom_call.1']
    #allocation4 [shape = 's32[1]{0}', space=sflag, size = 0x4, scoped, tag = 'scoped memory for tpu_custom_call.1']
    #allocation5 [shape = 'u8[2048]{0}', space=vmem, size = 0x800, scoped, tag = 'output window, operand 0, single buffered']
    %7 = vsyncpa [#allocation3], 0
    %8 = vsyncpa [#allocation4], 0
    // Predicated region
    $region2: #{tpu_custom_call.1} parent=1 // pred_check
      _
    $region3: #{tpu_custom_call.1} parent=1 // pred_check_branch
      %10 = sbr.rel (0) target = $region5
    $region4: #{tpu_custom_call.1} parent=1 // pred_region
      %s12 = ssub.s32 64, 64
      %13 = vsyncadd [#allocation3], %s12
      %s15 = sshll.u32 [#allocation2], 4
      %s16 = int_to_ptr.vmem [resolvable:$true] %s15
      %18 = dma.hbm_to_vmem [thread:$0]  %s0, 64, %s16, [#allocation3]
    $region5: #{tpu_custom_call.1} parent=1 // pred_fallthru
      _
    // Predicated region
    $region6: #{tpu_custom_call.1} parent=1 // pred_check
      _
    $region7: #{tpu_custom_call.1} parent=1 // pred_check_branch
      %20 = sbr.rel (0) target = $region9
    $region8: #{tpu_custom_call.1} parent=1 // pred_region
      _
    $region9: #{tpu_custom_call.1} parent=1 // pred_fallthru
      _
    // Predicated region
    $region10: #{tpu_custom_call.1} parent=1 // pred_check
      _
    $region11: #{tpu_custom_call.1} parent=1 // pred_check_branch
      %22 = sbr.rel (0) target = $region13
    $region12: #{tpu_custom_call.1} parent=1 // pred_region
      %23 = dma.done [#allocation3], 64
    $region13: #{tpu_custom_call.1} parent=1 // pred_fallthru
      _
    %v24 = vld [vmem:[#allocation2] sm:$0xf]
    %v25 = vld [vmem:[%s1] sm:$0x1]
    %v27 = vlaneseq
    %v28 = vshrl.u32 %v27, 7
    %v29 = vsub.s32 0, %v28
    %v30 = vrot.slane %v25, %v29
    %v32 = vmul.f32 %v24, %v30
    %33 = vst [vmem:[#allocation5] sm:$0xf] %v32
    // Predicated region
    $region14: #{tpu_custom_call.1} parent=1 // pred_check
      _
    $region15: #{tpu_custom_call.1} parent=1 // pred_check_branch
      %35 = sbr.rel (0) target = $region17
    $region16: #{tpu_custom_call.1} parent=1 // pred_region
      %s37 = ssub.s32 64, 64
      %38 = vsyncadd [#allocation4], %s37
      %s40 = sshll.u32 [#allocation5], 4
      %s41 = int_to_ptr.vmem [resolvable:$true] %s40
      %43 = dma.vmem_to_hbm [thread:$0]  %s41, 64, %s2, [#allocation4]
    $region17: #{tpu_custom_call.1} parent=1 // pred_fallthru
      _
    // Predicated region
    $region18: #{tpu_custom_call.1} parent=1 // pred_check
      _
    $region19: #{tpu_custom_call.1} parent=1 // pred_check_branch
      %45 = sbr.rel (0) target = $region21
    $region20: #{tpu_custom_call.1} parent=1 // pred_region
      %46 = dma.done [#allocation4], 64
    $region21: #{tpu_custom_call.1} parent=1 // pred_fallthru
      _
    %47 = vsyncpa [#allocation3], 1
    %48 = vsyncpa [#allocation4], 1

</llo_original>
